<compile_context>
chip_gen: v5e
topology: v5e:2x2
jax: 0.10.0
libtpu: 0.0.40
codegen_flags: <defaults>
</compile_context>

<pallas_src>
import jax
import jax.numpy as jnp
from jax.experimental import pallas as pl
from jax.experimental.pallas import tpu as pltpu

BETA = 0.95
THRESHOLD = 1.0
_UNROLL_MAX_STEPS = 16   # full static unroll below this, lax.fori_loop above


def _round_up(n, m):
    return ((n + m - 1) // m) * m


def _make_kernel(num_steps, bt, unroll):
    """bt = batch tile (multiple of 8); all feature dims already padded to 128."""

    def kernel(x_ref, w1t_ref, b1_ref, w2t_ref, b2_ref, w3t_ref, b3_ref,
               spk3_ref, *scratch):
        if unroll:
            spk1_buf, spk2_buf = scratch
            cur2_buf = cur3_buf = None
        else:
            spk1_buf, spk2_buf, cur2_buf, cur3_buf = scratch

        hidden = w1t_ref.shape[1]
        out_dim = w3t_ref.shape[1]

        def slab_start(t):
            start = t * bt
            if isinstance(start, int):          # unrolled path: static offset
                return start
            return pl.multiple_of(start, 8)     # fori path: bt is a multiple of 8

        def store_slab(buf):
            def store(t, spk):
                # Spikes are exactly 0/1 -> bf16 slab store is lossless and halves
                # store width (v5e has one vector-store slot).
                buf[pl.ds(slab_start(t), bt), :] = spk.astype(buf.dtype)
            return store

        def store_out(t, spk):
            spk3_ref[t] = spk.astype(spk3_ref.dtype)

        def lif_chain(cur_of_t, feat, store):
            """LIF recurrence over time.  reset_t == spk_{t-1} (carried directly),
            threshold == 1.0 so the reset subtraction needs no multiply."""
            mem0 = jnp.zeros((bt, feat), jnp.float32)
            spk0 = jnp.zeros((bt, feat), jnp.float32)

            def step(t, mem, spk):
                mem = BETA * mem + cur_of_t(t) - spk
                spk = (mem > THRESHOLD).astype(jnp.float32)
                store(t, spk)
                return mem, spk

            if unroll:
                mem, spk = mem0, spk0
                for t in range(num_steps):
                    mem, spk = step(t, mem, spk)
            else:
                jax.lax.fori_loop(0, num_steps,
                                  lambda t, c: step(t, *c),
                                  (mem0, spk0), unroll=2)

        # ---- layer 1: input current is constant across time -> one small f32 matmul.
        # Bias row added via implicit (1, N) broadcast (no materialized temporaries).
        cur1 = jnp.dot(x_ref[...], w1t_ref[...],
                       preferred_element_type=jnp.float32) + b1_ref[...]
        lif_chain(lambda t: cur1, hidden, store_slab(spk1_buf))

        # ---- layer 2: ONE batched matmul over all time steps (bf16 x bf16 -> f32 acc)
        cur2_all = jnp.dot(spk1_buf[...], w2t_ref[...],
                           preferred_element_type=jnp.float32) + b2_ref[...]
        if unroll:
            cur2_of_t = lambda t: cur2_all[t * bt:(t + 1) * bt, :]
        else:
            cur2_buf[...] = cur2_all
            cur2_of_t = lambda t: cur2_buf[pl.ds(slab_start(t), bt), :]
        lif_chain(cur2_of_t, hidden, store_slab(spk2_buf))

        # ---- layer 3: ONE batched matmul; spikes stored lane-dense to the output ----
        cur3_all = jnp.dot(spk2_buf[...], w3t_ref[...],
                           preferred_element_type=jnp.float32) + b3_ref[...]
        if unroll:
            cur3_of_t = lambda t: cur3_all[t * bt:(t + 1) * bt, :]
        else:
            cur3_buf[...] = cur3_all
            cur3_of_t = lambda t: cur3_buf[pl.ds(slab_start(t), bt), :]
        lif_chain(cur3_of_t, out_dim, store_out)

    return kernel


def snn_forward(x, params, num_steps, *, weights_dtype=jnp.bfloat16, batch_tile=None):
    """x: (batch, input_size).  params: W1,b1,W2,b2,W3,b3 with the PyTorch Linear
    convention W: (out, in), b: (out,).  Returns spk3: (num_steps, batch, output_size)."""
    batch, input_size = x.shape
    hidden_size = params["W1"].shape[0]
    output_size = params["W3"].shape[0]

    # TPU-native padding: lanes (last dim) -> 128, sublanes / batch tile -> 8.
    ip = _round_up(input_size, 128)
    hp = _round_up(hidden_size, 128)
    op = _round_up(output_size, 128)

    if batch_tile is None:
        batch_tile = min(_round_up(batch, 8), 128)
    bt = _round_up(batch_tile, 8)
    bp = _round_up(batch, bt)
    n_tiles = bp // bt

    unroll = num_steps <= _UNROLL_MAX_STEPS
    slab_dtype = weights_dtype   # spikes (0/1) are exact in bf16

    def pad2(a, rows, cols, dtype=jnp.float32):
        a = jnp.asarray(a, jnp.float32)
        out = jnp.zeros((rows, cols), jnp.float32)
        out = out.at[: a.shape[0], : a.shape[1]].set(a)
        return out.astype(dtype)

    # Pre-transpose weights to (in, out) so every layer is `act @ Wt + b_row`.
    x_p = pad2(x, bp, ip)
    w1t = pad2(params["W1"].T, ip, hp)                      # layer 1 stays f32
    w2t = pad2(params["W2"].T, hp, hp, weights_dtype)
    w3t = pad2(params["W3"].T, hp, op, weights_dtype)
    b1 = pad2(params["b1"].reshape(1, -1), 1, hp)
    b2 = pad2(params["b2"].reshape(1, -1), 1, hp)
    b3 = pad2(params["b3"].reshape(1, -1), 1, op)

    scratch = [pltpu.VMEM((num_steps * bt, hp), slab_dtype),   # spk1, all steps
               pltpu.VMEM((num_steps * bt, hp), slab_dtype)]   # spk2, all steps
    if not unroll:
        scratch += [pltpu.VMEM((num_steps * bt, hp), jnp.float32),   # cur2, all steps
                    pltpu.VMEM((num_steps * bt, op), jnp.float32)]   # cur3, all steps

    # Scoped-VMEM budget: whole-tile inputs/outputs (x2 for pipeline buffers), the
    # spike/current slabs, the batched-current temporaries, plus slack.
    wsz = jnp.dtype(weights_dtype).itemsize
    ssz = jnp.dtype(slab_dtype).itemsize
    io_bytes = (bt * ip * 4 + ip * hp * 4 + hp * hp * wsz + hp * op * wsz
                + 8 * (2 * hp + op) * 4 + num_steps * bt * op * 4)
    scratch_bytes = 2 * num_steps * bt * hp * ssz
    if not unroll:
        scratch_bytes += num_steps * bt * (hp + op) * 4
    temp_bytes = num_steps * bt * (hp + op) * 4 + bt * hp * 4
    vmem_bytes = int(2 * io_bytes + scratch_bytes + temp_bytes) + (4 << 20)
    vmem_bytes = max(32 << 20, min(vmem_bytes, 96 << 20))
    # TODO(synk): for very large num_steps*hidden (v7x has only 64 MiB VMEM) add a
    # time-chunk grid axis ("arbitrary") carrying mem/spk in scratch across chunks;
    # the batch-tile axis below already caps the per-core working set by batch.

    grid_spec = pltpu.PrefetchScalarGridSpec(
        num_scalar_prefetch=0,
        grid=(n_tiles,),
        in_specs=[
            pl.BlockSpec((bt, ip), lambda i: (i, 0)),     # x: batch-tiled
            pl.BlockSpec((ip, hp), lambda i: (0, 0)),     # W1^T (f32)
            pl.BlockSpec((1, hp), lambda i: (0, 0)),      # b1 row
            pl.BlockSpec((hp, hp), lambda i: (0, 0)),     # W2^T (bf16)
            pl.BlockSpec((1, hp), lambda i: (0, 0)),      # b2 row
            pl.BlockSpec((hp, op), lambda i: (0, 0)),     # W3^T (bf16)
            pl.BlockSpec((1, op), lambda i: (0, 0)),      # b3 row
        ],
        out_specs=pl.BlockSpec((num_steps, bt, op), lambda i: (0, i, 0)),
        scratch_shapes=scratch,
    )

    spk3_pad = pl.pallas_call(
        _make_kernel(num_steps, bt, unroll),
        out_shape=jax.ShapeDtypeStruct((num_steps, bp, op), jnp.float32),
        grid_spec=grid_spec,
        compiler_params=pltpu.CompilerParams(
            # Batch tiles are independent -> megacore-shard on v7x (2 TCs/chip).
            dimension_semantics=("parallel",),
            vmem_limit_bytes=vmem_bytes),
    )(x_p, w1t, b1, w2t, b2, w3t, b3)

    # NOTE: at real serving sizes, batch several requests per call so the layer-2/3
    # matmul M (= num_steps * batch_tile) reaches >=256; at tiny M the kernel is
    # launch/latency-bound regardless of micro-tuning.
    return spk3_pad[:, :batch, :output_size]


def init_params(key, input_size, hidden_size, output_size):
    """Deterministic PyTorch-Linear-style init: U(-1/sqrt(fan_in), 1/sqrt(fan_in))."""
    ks = jax.random.split(key, 6)

    def lin(kw, kb, fan_in, fan_out):
        bound = 1.0 / jnp.sqrt(fan_in)
        W = jax.random.uniform(kw, (fan_out, fan_in), jnp.float32, -bound, bound)
        b = jax.random.uniform(kb, (fan_out,), jnp.float32, -bound, bound)
        return W, b

    W1, b1 = lin(ks[0], ks[1], input_size, hidden_size)
    W2, b2 = lin(ks[2], ks[3], hidden_size, hidden_size)
    W3, b3 = lin(ks[4], ks[5], hidden_size, output_size)
    return {"W1": W1, "b1": b1, "W2": W2, "b2": b2, "W3": W3, "b3": b3}


def _reference(x, params, num_steps):
    """Pure-JAX reference of the same forward (snntorch Leaky, subtract reset)."""
    def lif(mem, cur):
        reset = (mem > THRESHOLD).astype(jnp.float32)
        mem = BETA * mem + cur - reset * THRESHOLD
        spk = (mem > THRESHOLD).astype(jnp.float32)
        return spk, mem

    mem1 = jnp.zeros((x.shape[0], params["W1"].shape[0]), jnp.float32)
    mem2 = jnp.zeros_like(mem1)
    mem3 = jnp.zeros((x.shape[0], params["W3"].shape[0]), jnp.float32)
    outs = []
    for _ in range(num_steps):
        cur1 = x @ params["W1"].T + params["b1"]
        spk1, mem1 = lif(mem1, cur1)
        cur2 = spk1 @ params["W2"].T + params["b2"]
        spk2, mem2 = lif(mem2, cur2)
        cur3 = spk2 @ params["W3"].T + params["b3"]
        spk3, mem3 = lif(mem3, cur3)
        outs.append(spk3)
    return jnp.stack(outs, axis=0)


if __name__ == "__main__":
    key = jax.random.PRNGKey(0)
    k_param, k_x = jax.random.split(key)

    batch = 4
    input_size = 32
    hidden_size = 32
    output_size = 10
    num_steps = 8

    params = init_params(k_param, input_size, hidden_size, output_size)
    # Scale input up a bit so some neurons actually spike.
    x = 4.0 * jax.random.uniform(k_x, (batch, input_size), jnp.float32)

    # --- check 1: f32 weights, short num_steps (fully-unrolled path) -> bit-exact ---
    spk3 = jax.block_until_ready(
        snn_forward(x, params, num_steps, weights_dtype=jnp.float32))
    ref = _reference(x, params, num_steps)
    assert spk3.shape == (num_steps, batch, output_size)
    assert jnp.allclose(spk3, ref), "unrolled f32 path mismatch vs reference"

    # --- check 2: f32 weights, long num_steps (lax.fori_loop path) -> bit-exact ---
    num_steps_long = 40
    spk3_l = jax.block_until_ready(
        snn_forward(x, params, num_steps_long, weights_dtype=jnp.float32))
    ref_l = _reference(x, params, num_steps_long)
    assert spk3_l.shape == (num_steps_long, batch, output_size)
    assert jnp.allclose(spk3_l, ref_l), "fori_loop f32 path mismatch vs reference"

    # --- check 3: default bf16 weight path.  Spikes are exact 0/1, but bf16 weight
    # products can (rarely) flip threshold-marginal spikes relative to any f32
    # evaluation, so compare against a bf16-rounded-weight reference and require a
    # near-zero disagreement rate rather than bit parity. ---
    params_bf16 = dict(params)
    params_bf16["W2"] = params["W2"].astype(jnp.bfloat16).astype(jnp.float32)
    params_bf16["W3"] = params["W3"].astype(jnp.bfloat16).astype(jnp.float32)
    spk3_b = jax.block_until_ready(snn_forward(x, params, num_steps))
    ref_b = _reference(x, params_bf16, num_steps)
    assert spk3_b.shape == (num_steps, batch, output_size)
    assert bool(jnp.all((spk3_b == 0.0) | (spk3_b == 1.0))), "non-binary spikes"
    mismatch = float(jnp.mean(jnp.abs(spk3_b - ref_b)))
    assert mismatch <= 0.05, f"bf16 path spike disagreement rate {mismatch}"

    print("KERNEL_OK")
</pallas_src>

<mosaic_0001>
module attributes {stable_mosaic.version = 11 : i64} {
  func.func @kernel(%arg0: i32, %arg1: memref<8x128xf32, #tpu.memory_space<vmem>>, %arg2: memref<128x128xf32, #tpu.memory_space<vmem>>, %arg3: memref<1x128xf32, #tpu.memory_space<vmem>>, %arg4: memref<128x128xf32, #tpu.memory_space<vmem>>, %arg5: memref<1x128xf32, #tpu.memory_space<vmem>>, %arg6: memref<128x128xf32, #tpu.memory_space<vmem>>, %arg7: memref<1x128xf32, #tpu.memory_space<vmem>>, %arg8: memref<8x8x128xf32, #tpu.memory_space<vmem>>, %arg9: memref<64x128xf32, #tpu.memory_space<vmem>>, %arg10: memref<64x128xf32, #tpu.memory_space<vmem>>) attributes {dimension_semantics = [#tpu.dimension_semantics<parallel>], iteration_bounds = array<i64: 1>, scalar_prefetch = 0 : i64, scratch_operands = 2 : i64, tpu.core_type = #tpu.core_type<tc>, window_params = [{transform_indices = @transform_0, window_bounds = array<i64: 8, 128>}, {pipeline_mode = #tpu.pipeline_mode<synchronous>, transform_indices = @transform_1, window_bounds = array<i64: 128, 128>}, {pipeline_mode = #tpu.pipeline_mode<synchronous>, transform_indices = @transform_2, window_bounds = array<i64: 1, 128>}, {pipeline_mode = #tpu.pipeline_mode<synchronous>, transform_indices = @transform_3, window_bounds = array<i64: 128, 128>}, {pipeline_mode = #tpu.pipeline_mode<synchronous>, transform_indices = @transform_4, window_bounds = array<i64: 1, 128>}, {pipeline_mode = #tpu.pipeline_mode<synchronous>, transform_indices = @transform_5, window_bounds = array<i64: 128, 128>}, {pipeline_mode = #tpu.pipeline_mode<synchronous>, transform_indices = @transform_6, window_bounds = array<i64: 1, 128>}, {transform_indices = @transform_7, window_bounds = array<i64: 8, 8, 128>}]} {
    %c0 = arith.constant 0 : index
    %c0_0 = arith.constant 0 : index
    %0 = vector.load %arg1[%c0, %c0_0] : memref<8x128xf32, #tpu.memory_space<vmem>>, vector<8x128xf32>
    %c0_1 = arith.constant 0 : index
    %c0_2 = arith.constant 0 : index
    %1 = vector.load %arg2[%c0_1, %c0_2] : memref<128x128xf32, #tpu.memory_space<vmem>>, vector<128x128xf32>
    %cst = arith.constant dense<0.000000e+00> : vector<8x128xf32>
    %2 = tpu.matmul %0, %1, %cst {dimension_numbers = #tpu.dot_dimension_numbers<[1], [0], [0], [1], [0, 0, 1, 1], [], []>} : vector<8x128xf32>, vector<128x128xf32>, vector<8x128xf32> -> vector<8x128xf32>
    %c0_3 = arith.constant 0 : index
    %c0_4 = arith.constant 0 : index
    %3 = vector.load %arg3[%c0_3, %c0_4] : memref<1x128xf32, #tpu.memory_space<vmem>>, vector<1x128xf32>
    %4 = vector.broadcast %3 : vector<1x128xf32> to vector<8x128xf32>
    %5 = arith.addf %2, %4 : vector<8x128xf32>
    %cst_5 = arith.constant 0.000000e+00 : f32
    %6 = vector.broadcast %cst_5 : f32 to vector<8x128xf32>
    %cst_6 = arith.constant 0.000000e+00 : f32
    %7 = vector.broadcast %cst_6 : f32 to vector<8x128xf32>
    %cst_7 = arith.constant 0.949999988 : f32
    %8 = vector.broadcast %cst_7 : f32 to vector<8x128xf32>
    %9 = arith.mulf %8, %6 : vector<8x128xf32>
    %10 = arith.addf %9, %5 : vector<8x128xf32>
    %11 = arith.subf %10, %7 : vector<8x128xf32>
    %cst_8 = arith.constant 1.000000e+00 : f32
    %12 = vector.broadcast %cst_8 : f32 to vector<8x128xf32>
    %13 = arith.cmpf ogt, %11, %12 : vector<8x128xf32>
    %14 = arith.extui %13 : vector<8x128xi1> to vector<8x128xi32>
    %15 = arith.sitofp %14 : vector<8x128xi32> to vector<8x128xf32>
    %c0_9 = arith.constant 0 : index
    %c0_10 = arith.constant 0 : index
    %16 = vector.load %arg9[%c0_9, %c0_10] : memref<64x128xf32, #tpu.memory_space<vmem>>, vector<8x128xf32>
    tpu.vector_store %arg9[%c0_9, %c0_10], %15 {strides = array<i32>} : memref<64x128xf32, #tpu.memory_space<vmem>>, vector<8x128xf32>,
    %cst_11 = arith.constant 0.949999988 : f32
    %17 = vector.broadcast %cst_11 : f32 to vector<8x128xf32>
    %18 = arith.mulf %17, %11 : vector<8x128xf32>
    %19 = arith.addf %18, %5 : vector<8x128xf32>
    %20 = arith.subf %19, %15 : vector<8x128xf32>
    %cst_12 = arith.constant 1.000000e+00 : f32
    %21 = vector.broadcast %cst_12 : f32 to vector<8x128xf32>
    %22 = arith.cmpf ogt, %20, %21 : vector<8x128xf32>
    %23 = arith.extui %22 : vector<8x128xi1> to vector<8x128xi32>
    %24 = arith.sitofp %23 : vector<8x128xi32> to vector<8x128xf32>
    %c8 = arith.constant 8 : index
    %c0_13 = arith.constant 0 : index
    %25 = vector.load %arg9[%c8, %c0_13] : memref<64x128xf32, #tpu.memory_space<vmem>>, vector<8x128xf32>
    tpu.vector_store %arg9[%c8, %c0_13], %24 {strides = array<i32>} : memref<64x128xf32, #tpu.memory_space<vmem>>, vector<8x128xf32>,
    %cst_14 = arith.constant 0.949999988 : f32
    %26 = vector.broadcast %cst_14 : f32 to vector<8x128xf32>
    %27 = arith.mulf %26, %20 : vector<8x128xf32>
    %28 = arith.addf %27, %5 : vector<8x128xf32>
    %29 = arith.subf %28, %24 : vector<8x128xf32>
    %cst_15 = arith.constant 1.000000e+00 : f32
    %30 = vector.broadcast %cst_15 : f32 to vector<8x128xf32>
    %31 = arith.cmpf ogt, %29, %30 : vector<8x128xf32>
    %32 = arith.extui %31 : vector<8x128xi1> to vector<8x128xi32>
    %33 = arith.sitofp %32 : vector<8x128xi32> to vector<8x128xf32>
    %c16 = arith.constant 16 : index
    %c0_16 = arith.constant 0 : index
    %34 = vector.load %arg9[%c16, %c0_16] : memref<64x128xf32, #tpu.memory_space<vmem>>, vector<8x128xf32>
    tpu.vector_store %arg9[%c16, %c0_16], %33 {strides = array<i32>} : memref<64x128xf32, #tpu.memory_space<vmem>>, vector<8x128xf32>,
    %cst_17 = arith.constant 0.949999988 : f32
    %35 = vector.broadcast %cst_17 : f32 to vector<8x128xf32>
    %36 = arith.mulf %35, %29 : vector<8x128xf32>
    %37 = arith.addf %36, %5 : vector<8x128xf32>
    %38 = arith.subf %37, %33 : vector<8x128xf32>
    %cst_18 = arith.constant 1.000000e+00 : f32
    %39 = vector.broadcast %cst_18 : f32 to vector<8x128xf32>
    %40 = arith.cmpf ogt, %38, %39 : vector<8x128xf32>
    %41 = arith.extui %40 : vector<8x128xi1> to vector<8x128xi32>
    %42 = arith.sitofp %41 : vector<8x128xi32> to vector<8x128xf32>
    %c24 = arith.constant 24 : index
    %c0_19 = arith.constant 0 : index
    %43 = vector.load %arg9[%c24, %c0_19] : memref<64x128xf32, #tpu.memory_space<vmem>>, vector<8x128xf32>
    tpu.vector_store %arg9[%c24, %c0_19], %42 {strides = array<i32>} : memref<64x128xf32, #tpu.memory_space<vmem>>, vector<8x128xf32>,
    %cst_20 = arith.constant 0.949999988 : f32
    %44 = vector.broadcast %cst_20 : f32 to vector<8x128xf32>
    %45 = arith.mulf %44, %38 : vector<8x128xf32>
    %46 = arith.addf %45, %5 : vector<8x128xf32>
    %47 = arith.subf %46, %42 : vector<8x128xf32>
    %cst_21 = arith.constant 1.000000e+00 : f32
    %48 = vector.broadcast %cst_21 : f32 to vector<8x128xf32>
    %49 = arith.cmpf ogt, %47, %48 : vector<8x128xf32>
    %50 = arith.extui %49 : vector<8x128xi1> to vector<8x128xi32>
    %51 = arith.sitofp %50 : vector<8x128xi32> to vector<8x128xf32>
    %c32 = arith.constant 32 : index
    %c0_22 = arith.constant 0 : index
    %52 = vector.load %arg9[%c32, %c0_22] : memref<64x128xf32, #tpu.memory_space<vmem>>, vector<8x128xf32>
    tpu.vector_store %arg9[%c32, %c0_22], %51 {strides = array<i32>} : memref<64x128xf32, #tpu.memory_space<vmem>>, vector<8x128xf32>,
    %cst_23 = arith.constant 0.949999988 : f32
    %53 = vector.broadcast %cst_23 : f32 to vector<8x128xf32>
    %54 = arith.mulf %53, %47 : vector<8x128xf32>
    %55 = arith.addf %54, %5 : vector<8x128xf32>
    %56 = arith.subf %55, %51 : vector<8x128xf32>
    %cst_24 = arith.constant 1.000000e+00 : f32
    %57 = vector.broadcast %cst_24 : f32 to vector<8x128xf32>
    %58 = arith.cmpf ogt, %56, %57 : vector<8x128xf32>
    %59 = arith.extui %58 : vector<8x128xi1> to vector<8x128xi32>
    %60 = arith.sitofp %59 : vector<8x128xi32> to vector<8x128xf32>
    %c40 = arith.constant 40 : index
    %c0_25 = arith.constant 0 : index
    %61 = vector.load %arg9[%c40, %c0_25] : memref<64x128xf32, #tpu.memory_space<vmem>>, vector<8x128xf32>
    tpu.vector_store %arg9[%c40, %c0_25], %60 {strides = array<i32>} : memref<64x128xf32, #tpu.memory_space<vmem>>, vector<8x128xf32>,
    %cst_26 = arith.constant 0.949999988 : f32
    %62 = vector.broadcast %cst_26 : f32 to vector<8x128xf32>
    %63 = arith.mulf %62, %56 : vector<8x128xf32>
    %64 = arith.addf %63, %5 : vector<8x128xf32>
    %65 = arith.subf %64, %60 : vector<8x128xf32>
    %cst_27 = arith.constant 1.000000e+00 : f32
    %66 = vector.broadcast %cst_27 : f32 to vector<8x128xf32>
    %67 = arith.cmpf ogt, %65, %66 : vector<8x128xf32>
    %68 = arith.extui %67 : vector<8x128xi1> to vector<8x128xi32>
    %69 = arith.sitofp %68 : vector<8x128xi32> to vector<8x128xf32>
    %c48 = arith.constant 48 : index
    %c0_28 = arith.constant 0 : index
    %70 = vector.load %arg9[%c48, %c0_28] : memref<64x128xf32, #tpu.memory_space<vmem>>, vector<8x128xf32>
    tpu.vector_store %arg9[%c48, %c0_28], %69 {strides = array<i32>} : memref<64x128xf32, #tpu.memory_space<vmem>>, vector<8x128xf32>,
    %cst_29 = arith.constant 0.949999988 : f32
    %71 = vector.broadcast %cst_29 : f32 to vector<8x128xf32>
    %72 = arith.mulf %71, %65 : vector<8x128xf32>
    %73 = arith.addf %72, %5 : vector<8x128xf32>
    %74 = arith.subf %73, %69 : vector<8x128xf32>
    %cst_30 = arith.constant 1.000000e+00 : f32
    %75 = vector.broadcast %cst_30 : f32 to vector<8x128xf32>
    %76 = arith.cmpf ogt, %74, %75 : vector<8x128xf32>
    %77 = arith.extui %76 : vector<8x128xi1> to vector<8x128xi32>
    %78 = arith.sitofp %77 : vector<8x128xi32> to vector<8x128xf32>
    %c56 = arith.constant 56 : index
    %c0_31 = arith.constant 0 : index
    %79 = vector.load %arg9[%c56, %c0_31] : memref<64x128xf32, #tpu.memory_space<vmem>>, vector<8x128xf32>
    tpu.vector_store %arg9[%c56, %c0_31], %78 {strides = array<i32>} : memref<64x128xf32, #tpu.memory_space<vmem>>, vector<8x128xf32>,
    %c0_32 = arith.constant 0 : index
    %c0_33 = arith.constant 0 : index
    %80 = vector.load %arg9[%c0_32, %c0_33] : memref<64x128xf32, #tpu.memory_space<vmem>>, vector<64x128xf32>
    %c0_34 = arith.constant 0 : index
    %c0_35 = arith.constant 0 : index
    %81 = vector.load %arg4[%c0_34, %c0_35] : memref<128x128xf32, #tpu.memory_space<vmem>>, vector<128x128xf32>
    %cst_36 = arith.constant dense<0.000000e+00> : vector<64x128xf32>
    %82 = tpu.matmul %80, %81, %cst_36 {dimension_numbers = #tpu.dot_dimension_numbers<[1], [0], [0], [1], [0, 0, 1, 1], [], []>} : vector<64x128xf32>, vector<128x128xf32>, vector<64x128xf32> -> vector<64x128xf32>
    %c0_37 = arith.constant 0 : index
    %c0_38 = arith.constant 0 : index
    %83 = vector.load %arg5[%c0_37, %c0_38] : memref<1x128xf32, #tpu.memory_space<vmem>>, vector<1x128xf32>
    %84 = vector.broadcast %83 : vector<1x128xf32> to vector<64x128xf32>
    %85 = arith.addf %82, %84 : vector<64x128xf32>
    %cst_39 = arith.constant 0.000000e+00 : f32
    %86 = vector.broadcast %cst_39 : f32 to vector<8x128xf32>
    %cst_40 = arith.constant 0.000000e+00 : f32
    %87 = vector.broadcast %cst_40 : f32 to vector<8x128xf32>
    %cst_41 = arith.constant 0.949999988 : f32
    %88 = vector.broadcast %cst_41 : f32 to vector<8x128xf32>
    %89 = arith.mulf %88, %86 : vector<8x128xf32>
    %90 = vector.extract_strided_slice %85 {offsets = [0, 0], sizes = [8, 128], strides = [1, 1]} : vector<64x128xf32> to vector<8x128xf32>
    %91 = arith.addf %89, %90 : vector<8x128xf32>
    %92 = arith.subf %91, %87 : vector<8x128xf32>
    %cst_42 = arith.constant 1.000000e+00 : f32
    %93 = vector.broadcast %cst_42 : f32 to vector<8x128xf32>
    %94 = arith.cmpf ogt, %92, %93 : vector<8x128xf32>
    %95 = arith.extui %94 : vector<8x128xi1> to vector<8x128xi32>
    %96 = arith.sitofp %95 : vector<8x128xi32> to vector<8x128xf32>
    %c0_43 = arith.constant 0 : index
    %c0_44 = arith.constant 0 : index
    %97 = vector.load %arg10[%c0_43, %c0_44] : memref<64x128xf32, #tpu.memory_space<vmem>>, vector<8x128xf32>
    tpu.vector_store %arg10[%c0_43, %c0_44], %96 {strides = array<i32>} : memref<64x128xf32, #tpu.memory_space<vmem>>, vector<8x128xf32>,
    %cst_45 = arith.constant 0.949999988 : f32
    %98 = vector.broadcast %cst_45 : f32 to vector<8x128xf32>
    %99 = arith.mulf %98, %92 : vector<8x128xf32>
    %100 = vector.extract_strided_slice %85 {offsets = [8, 0], sizes = [8, 128], strides = [1, 1]} : vector<64x128xf32> to vector<8x128xf32>
    %101 = arith.addf %99, %100 : vector<8x128xf32>
    %102 = arith.subf %101, %96 : vector<8x128xf32>
    %cst_46 = arith.constant 1.000000e+00 : f32
    %103 = vector.broadcast %cst_46 : f32 to vector<8x128xf32>
    %104 = arith.cmpf ogt, %102, %103 : vector<8x128xf32>
    %105 = arith.extui %104 : vector<8x128xi1> to vector<8x128xi32>
    %106 = arith.sitofp %105 : vector<8x128xi32> to vector<8x128xf32>
    %c8_47 = arith.constant 8 : index
    %c0_48 = arith.constant 0 : index
    %107 = vector.load %arg10[%c8_47, %c0_48] : memref<64x128xf32, #tpu.memory_space<vmem>>, vector<8x128xf32>
    tpu.vector_store %arg10[%c8_47, %c0_48], %106 {strides = array<i32>} : memref<64x128xf32, #tpu.memory_space<vmem>>, vector<8x128xf32>,
    %cst_49 = arith.constant 0.949999988 : f32
    %108 = vector.broadcast %cst_49 : f32 to vector<8x128xf32>
    %109 = arith.mulf %108, %102 : vector<8x128xf32>
    %110 = vector.extract_strided_slice %85 {offsets = [16, 0], sizes = [8, 128], strides = [1, 1]} : vector<64x128xf32> to vector<8x128xf32>
    %111 = arith.addf %109, %110 : vector<8x128xf32>
    %112 = arith.subf %111, %106 : vector<8x128xf32>
    %cst_50 = arith.constant 1.000000e+00 : f32
    %113 = vector.broadcast %cst_50 : f32 to vector<8x128xf32>
    %114 = arith.cmpf ogt, %112, %113 : vector<8x128xf32>
    %115 = arith.extui %114 : vector<8x128xi1> to vector<8x128xi32>
    %116 = arith.sitofp %115 : vector<8x128xi32> to vector<8x128xf32>
    %c16_51 = arith.constant 16 : index
    %c0_52 = arith.constant 0 : index
    %117 = vector.load %arg10[%c16_51, %c0_52] : memref<64x128xf32, #tpu.memory_space<vmem>>, vector<8x128xf32>
    tpu.vector_store %arg10[%c16_51, %c0_52], %116 {strides = array<i32>} : memref<64x128xf32, #tpu.memory_space<vmem>>, vector<8x128xf32>,
    %cst_53 = arith.constant 0.949999988 : f32
    %118 = vector.broadcast %cst_53 : f32 to vector<8x128xf32>
    %119 = arith.mulf %118, %112 : vector<8x128xf32>
    %120 = vector.extract_strided_slice %85 {offsets = [24, 0], sizes = [8, 128], strides = [1, 1]} : vector<64x128xf32> to vector<8x128xf32>
    %121 = arith.addf %119, %120 : vector<8x128xf32>
    %122 = arith.subf %121, %116 : vector<8x128xf32>
    %cst_54 = arith.constant 1.000000e+00 : f32
    %123 = vector.broadcast %cst_54 : f32 to vector<8x128xf32>
    %124 = arith.cmpf ogt, %122, %123 : vector<8x128xf32>
    %125 = arith.extui %124 : vector<8x128xi1> to vector<8x128xi32>
    %126 = arith.sitofp %125 : vector<8x128xi32> to vector<8x128xf32>
    %c24_55 = arith.constant 24 : index
    %c0_56 = arith.constant 0 : index
    %127 = vector.load %arg10[%c24_55, %c0_56] : memref<64x128xf32, #tpu.memory_space<vmem>>, vector<8x128xf32>
    tpu.vector_store %arg10[%c24_55, %c0_56], %126 {strides = array<i32>} : memref<64x128xf32, #tpu.memory_space<vmem>>, vector<8x128xf32>,
    %cst_57 = arith.constant 0.949999988 : f32
    %128 = vector.broadcast %cst_57 : f32 to vector<8x128xf32>
    %129 = arith.mulf %128, %122 : vector<8x128xf32>
    %130 = vector.extract_strided_slice %85 {offsets = [32, 0], sizes = [8, 128], strides = [1, 1]} : vector<64x128xf32> to vector<8x128xf32>
    %131 = arith.addf %129, %130 : vector<8x128xf32>
    %132 = arith.subf %131, %126 : vector<8x128xf32>
    %cst_58 = arith.constant 1.000000e+00 : f32
    %133 = vector.broadcast %cst_58 : f32 to vector<8x128xf32>
    %134 = arith.cmpf ogt, %132, %133 : vector<8x128xf32>
    %135 = arith.extui %134 : vector<8x128xi1> to vector<8x128xi32>
    %136 = arith.sitofp %135 : vector<8x128xi32> to vector<8x128xf32>
    %c32_59 = arith.constant 32 : index
    %c0_60 = arith.constant 0 : index
    %137 = vector.load %arg10[%c32_59, %c0_60] : memref<64x128xf32, #tpu.memory_space<vmem>>, vector<8x128xf32>
    tpu.vector_store %arg10[%c32_59, %c0_60], %136 {strides = array<i32>} : memref<64x128xf32, #tpu.memory_space<vmem>>, vector<8x128xf32>,
    %cst_61 = arith.constant 0.949999988 : f32
    %138 = vector.broadcast %cst_61 : f32 to vector<8x128xf32>
    %139 = arith.mulf %138, %132 : vector<8x128xf32>
    %140 = vector.extract_strided_slice %85 {offsets = [40, 0], sizes = [8, 128], strides = [1, 1]} : vector<64x128xf32> to vector<8x128xf32>
    %141 = arith.addf %139, %140 : vector<8x128xf32>
    %142 = arith.subf %141, %136 : vector<8x128xf32>
    %cst_62 = arith.constant 1.000000e+00 : f32
    %143 = vector.broadcast %cst_62 : f32 to vector<8x128xf32>
    %144 = arith.cmpf ogt, %142, %143 : vector<8x128xf32>
    %145 = arith.extui %144 : vector<8x128xi1> to vector<8x128xi32>
    %146 = arith.sitofp %145 : vector<8x128xi32> to vector<8x128xf32>
    %c40_63 = arith.constant 40 : index
    %c0_64 = arith.constant 0 : index
    %147 = vector.load %arg10[%c40_63, %c0_64] : memref<64x128xf32, #tpu.memory_space<vmem>>, vector<8x128xf32>
    tpu.vector_store %arg10[%c40_63, %c0_64], %146 {strides = array<i32>} : memref<64x128xf32, #tpu.memory_space<vmem>>, vector<8x128xf32>,
    %cst_65 = arith.constant 0.949999988 : f32
    %148 = vector.broadcast %cst_65 : f32 to vector<8x128xf32>
    %149 = arith.mulf %148, %142 : vector<8x128xf32>
    %150 = vector.extract_strided_slice %85 {offsets = [48, 0], sizes = [8, 128], strides = [1, 1]} : vector<64x128xf32> to vector<8x128xf32>
    %151 = arith.addf %149, %150 : vector<8x128xf32>
    %152 = arith.subf %151, %146 : vector<8x128xf32>
    %cst_66 = arith.constant 1.000000e+00 : f32
    %153 = vector.broadcast %cst_66 : f32 to vector<8x128xf32>
    %154 = arith.cmpf ogt, %152, %153 : vector<8x128xf32>
    %155 = arith.extui %154 : vector<8x128xi1> to vector<8x128xi32>
    %156 = arith.sitofp %155 : vector<8x128xi32> to vector<8x128xf32>
    %c48_67 = arith.constant 48 : index
    %c0_68 = arith.constant 0 : index
    %157 = vector.load %arg10[%c48_67, %c0_68] : memref<64x128xf32, #tpu.memory_space<vmem>>, vector<8x128xf32>
    tpu.vector_store %arg10[%c48_67, %c0_68], %156 {strides = array<i32>} : memref<64x128xf32, #tpu.memory_space<vmem>>, vector<8x128xf32>,
    %cst_69 = arith.constant 0.949999988 : f32
    %158 = vector.broadcast %cst_69 : f32 to vector<8x128xf32>
    %159 = arith.mulf %158, %152 : vector<8x128xf32>
    %160 = vector.extract_strided_slice %85 {offsets = [56, 0], sizes = [8, 128], strides = [1, 1]} : vector<64x128xf32> to vector<8x128xf32>
    %161 = arith.addf %159, %160 : vector<8x128xf32>
    %162 = arith.subf %161, %156 : vector<8x128xf32>
    %cst_70 = arith.constant 1.000000e+00 : f32
    %163 = vector.broadcast %cst_70 : f32 to vector<8x128xf32>
    %164 = arith.cmpf ogt, %162, %163 : vector<8x128xf32>
    %165 = arith.extui %164 : vector<8x128xi1> to vector<8x128xi32>
    %166 = arith.sitofp %165 : vector<8x128xi32> to vector<8x128xf32>
    %c56_71 = arith.constant 56 : index
    %c0_72 = arith.constant 0 : index
    %167 = vector.load %arg10[%c56_71, %c0_72] : memref<64x128xf32, #tpu.memory_space<vmem>>, vector<8x128xf32>
    tpu.vector_store %arg10[%c56_71, %c0_72], %166 {strides = array<i32>} : memref<64x128xf32, #tpu.memory_space<vmem>>, vector<8x128xf32>,
    %c0_73 = arith.constant 0 : index
    %c0_74 = arith.constant 0 : index
    %168 = vector.load %arg10[%c0_73, %c0_74] : memref<64x128xf32, #tpu.memory_space<vmem>>, vector<64x128xf32>
    %c0_75 = arith.constant 0 : index
    %c0_76 = arith.constant 0 : index
    %169 = vector.load %arg6[%c0_75, %c0_76] : memref<128x128xf32, #tpu.memory_space<vmem>>, vector<128x128xf32>
    %cst_77 = arith.constant dense<0.000000e+00> : vector<64x128xf32>
    %170 = tpu.matmul %168, %169, %cst_77 {dimension_numbers = #tpu.dot_dimension_numbers<[1], [0], [0], [1], [0, 0, 1, 1], [], []>} : vector<64x128xf32>, vector<128x128xf32>, vector<64x128xf32> -> vector<64x128xf32>
    %c0_78 = arith.constant 0 : index
    %c0_79 = arith.constant 0 : index
    %171 = vector.load %arg7[%c0_78, %c0_79] : memref<1x128xf32, #tpu.memory_space<vmem>>, vector<1x128xf32>
    %172 = vector.broadcast %171 : vector<1x128xf32> to vector<64x128xf32>
    %173 = arith.addf %170, %172 : vector<64x128xf32>
    %cst_80 = arith.constant 0.000000e+00 : f32
    %174 = vector.broadcast %cst_80 : f32 to vector<8x128xf32>
    %cst_81 = arith.constant 0.000000e+00 : f32
    %175 = vector.broadcast %cst_81 : f32 to vector<8x128xf32>
    %cst_82 = arith.constant 0.949999988 : f32
    %176 = vector.broadcast %cst_82 : f32 to vector<8x128xf32>
    %177 = arith.mulf %176, %174 : vector<8x128xf32>
    %178 = vector.extract_strided_slice %173 {offsets = [0, 0], sizes = [8, 128], strides = [1, 1]} : vector<64x128xf32> to vector<8x128xf32>
    %179 = arith.addf %177, %178 : vector<8x128xf32>
    %180 = arith.subf %179, %175 : vector<8x128xf32>
    %cst_83 = arith.constant 1.000000e+00 : f32
    %181 = vector.broadcast %cst_83 : f32 to vector<8x128xf32>
    %182 = arith.cmpf ogt, %180, %181 : vector<8x128xf32>
    %183 = arith.extui %182 : vector<8x128xi1> to vector<8x128xi32>
    %184 = arith.sitofp %183 : vector<8x128xi32> to vector<8x128xf32>
    %c0_84 = arith.constant 0 : index
    %c0_85 = arith.constant 0 : index
    %c0_86 = arith.constant 0 : index
    %185 = vector.load %arg8[%c0_84, %c0_85, %c0_86] : memref<8x8x128xf32, #tpu.memory_space<vmem>>, vector<1x8x128xf32>
    %186 = vector.shape_cast %185 : vector<1x8x128xf32> to vector<8x128xf32>
    %187 = vector.shape_cast %184 : vector<8x128xf32> to vector<1x8x128xf32>
    tpu.vector_store %arg8[%c0_84, %c0_85, %c0_86], %187 {strides = array<i32>} : memref<8x8x128xf32, #tpu.memory_space<vmem>>, vector<1x8x128xf32>,
    %cst_87 = arith.constant 0.949999988 : f32
    %188 = vector.broadcast %cst_87 : f32 to vector<8x128xf32>
    %189 = arith.mulf %188, %180 : vector<8x128xf32>
    %190 = vector.extract_strided_slice %173 {offsets = [8, 0], sizes = [8, 128], strides = [1, 1]} : vector<64x128xf32> to vector<8x128xf32>
    %191 = arith.addf %189, %190 : vector<8x128xf32>
    %192 = arith.subf %191, %184 : vector<8x128xf32>
    %cst_88 = arith.constant 1.000000e+00 : f32
    %193 = vector.broadcast %cst_88 : f32 to vector<8x128xf32>
    %194 = arith.cmpf ogt, %192, %193 : vector<8x128xf32>
    %195 = arith.extui %194 : vector<8x128xi1> to vector<8x128xi32>
    %196 = arith.sitofp %195 : vector<8x128xi32> to vector<8x128xf32>
    %c1 = arith.constant 1 : index
    %c0_89 = arith.constant 0 : index
    %c0_90 = arith.constant 0 : index
    %197 = vector.load %arg8[%c1, %c0_89, %c0_90] : memref<8x8x128xf32, #tpu.memory_space<vmem>>, vector<1x8x128xf32>
    %198 = vector.shape_cast %197 : vector<1x8x128xf32> to vector<8x128xf32>
    %199 = vector.shape_cast %196 : vector<8x128xf32> to vector<1x8x128xf32>
    tpu.vector_store %arg8[%c1, %c0_89, %c0_90], %199 {strides = array<i32>} : memref<8x8x128xf32, #tpu.memory_space<vmem>>, vector<1x8x128xf32>,
    %cst_91 = arith.constant 0.949999988 : f32
    %200 = vector.broadcast %cst_91 : f32 to vector<8x128xf32>
    %201 = arith.mulf %200, %192 : vector<8x128xf32>
    %202 = vector.extract_strided_slice %173 {offsets = [16, 0], sizes = [8, 128], strides = [1, 1]} : vector<64x128xf32> to vector<8x128xf32>
    %203 = arith.addf %201, %202 : vector<8x128xf32>
    %204 = arith.subf %203, %196 : vector<8x128xf32>
    %cst_92 = arith.constant 1.000000e+00 : f32
    %205 = vector.broadcast %cst_92 : f32 to vector<8x128xf32>
    %206 = arith.cmpf ogt, %204, %205 : vector<8x128xf32>
    %207 = arith.extui %206 : vector<8x128xi1> to vector<8x128xi32>
    %208 = arith.sitofp %207 : vector<8x128xi32> to vector<8x128xf32>
    %c2 = arith.constant 2 : index
    %c0_93 = arith.constant 0 : index
    %c0_94 = arith.constant 0 : index
    %209 = vector.load %arg8[%c2, %c0_93, %c0_94] : memref<8x8x128xf32, #tpu.memory_space<vmem>>, vector<1x8x128xf32>
    %210 = vector.shape_cast %209 : vector<1x8x128xf32> to vector<8x128xf32>
    %211 = vector.shape_cast %208 : vector<8x128xf32> to vector<1x8x128xf32>
    tpu.vector_store %arg8[%c2, %c0_93, %c0_94], %211 {strides = array<i32>} : memref<8x8x128xf32, #tpu.memory_space<vmem>>, vector<1x8x128xf32>,
    %cst_95 = arith.constant 0.949999988 : f32
    %212 = vector.broadcast %cst_95 : f32 to vector<8x128xf32>
    %213 = arith.mulf %212, %204 : vector<8x128xf32>
    %214 = vector.extract_strided_slice %173 {offsets = [24, 0], sizes = [8, 128], strides = [1, 1]} : vector<64x128xf32> to vector<8x128xf32>
    %215 = arith.addf %213, %214 : vector<8x128xf32>
    %216 = arith.subf %215, %208 : vector<8x128xf32>
    %cst_96 = arith.constant 1.000000e+00 : f32
    %217 = vector.broadcast %cst_96 : f32 to vector<8x128xf32>
    %218 = arith.cmpf ogt, %216, %217 : vector<8x128xf32>
    %219 = arith.extui %218 : vector<8x128xi1> to vector<8x128xi32>
    %220 = arith.sitofp %219 : vector<8x128xi32> to vector<8x128xf32>
    %c3 = arith.constant 3 : index
    %c0_97 = arith.constant 0 : index
    %c0_98 = arith.constant 0 : index
    %221 = vector.load %arg8[%c3, %c0_97, %c0_98] : memref<8x8x128xf32, #tpu.memory_space<vmem>>, vector<1x8x128xf32>
    %222 = vector.shape_cast %221 : vector<1x8x128xf32> to vector<8x128xf32>
    %223 = vector.shape_cast %220 : vector<8x128xf32> to vector<1x8x128xf32>
    tpu.vector_store %arg8[%c3, %c0_97, %c0_98], %223 {strides = array<i32>} : memref<8x8x128xf32, #tpu.memory_space<vmem>>, vector<1x8x128xf32>,
    %cst_99 = arith.constant 0.949999988 : f32
    %224 = vector.broadcast %cst_99 : f32 to vector<8x128xf32>
    %225 = arith.mulf %224, %216 : vector<8x128xf32>
    %226 = vector.extract_strided_slice %173 {offsets = [32, 0], sizes = [8, 128], strides = [1, 1]} : vector<64x128xf32> to vector<8x128xf32>
    %227 = arith.addf %225, %226 : vector<8x128xf32>
    %228 = arith.subf %227, %220 : vector<8x128xf32>
    %cst_100 = arith.constant 1.000000e+00 : f32
    %229 = vector.broadcast %cst_100 : f32 to vector<8x128xf32>
    %230 = arith.cmpf ogt, %228, %229 : vector<8x128xf32>
    %231 = arith.extui %230 : vector<8x128xi1> to vector<8x128xi32>
    %232 = arith.sitofp %231 : vector<8x128xi32> to vector<8x128xf32>
    %c4 = arith.constant 4 : index
    %c0_101 = arith.constant 0 : index
    %c0_102 = arith.constant 0 : index
    %233 = vector.load %arg8[%c4, %c0_101, %c0_102] : memref<8x8x128xf32, #tpu.memory_space<vmem>>, vector<1x8x128xf32>
    %234 = vector.shape_cast %233 : vector<1x8x128xf32> to vector<8x128xf32>
    %235 = vector.shape_cast %232 : vector<8x128xf32> to vector<1x8x128xf32>
    tpu.vector_store %arg8[%c4, %c0_101, %c0_102], %235 {strides = array<i32>} : memref<8x8x128xf32, #tpu.memory_space<vmem>>, vector<1x8x128xf32>,
    %cst_103 = arith.constant 0.949999988 : f32
    %236 = vector.broadcast %cst_103 : f32 to vector<8x128xf32>
    %237 = arith.mulf %236, %228 : vector<8x128xf32>
    %238 = vector.extract_strided_slice %173 {offsets = [40, 0], sizes = [8, 128], strides = [1, 1]} : vector<64x128xf32> to vector<8x128xf32>
    %239 = arith.addf %237, %238 : vector<8x128xf32>
    %240 = arith.subf %239, %232 : vector<8x128xf32>
    %cst_104 = arith.constant 1.000000e+00 : f32
    %241 = vector.broadcast %cst_104 : f32 to vector<8x128xf32>
    %242 = arith.cmpf ogt, %240, %241 : vector<8x128xf32>
    %243 = arith.extui %242 : vector<8x128xi1> to vector<8x128xi32>
    %244 = arith.sitofp %243 : vector<8x128xi32> to vector<8x128xf32>
    %c5 = arith.constant 5 : index
    %c0_105 = arith.constant 0 : index
    %c0_106 = arith.constant 0 : index
    %245 = vector.load %arg8[%c5, %c0_105, %c0_106] : memref<8x8x128xf32, #tpu.memory_space<vmem>>, vector<1x8x128xf32>
    %246 = vector.shape_cast %245 : vector<1x8x128xf32> to vector<8x128xf32>
    %247 = vector.shape_cast %244 : vector<8x128xf32> to vector<1x8x128xf32>
    tpu.vector_store %arg8[%c5, %c0_105, %c0_106], %247 {strides = array<i32>} : memref<8x8x128xf32, #tpu.memory_space<vmem>>, vector<1x8x128xf32>,
    %cst_107 = arith.constant 0.949999988 : f32
    %248 = vector.broadcast %cst_107 : f32 to vector<8x128xf32>
    %249 = arith.mulf %248, %240 : vector<8x128xf32>
    %250 = vector.extract_strided_slice %173 {offsets = [48, 0], sizes = [8, 128], strides = [1, 1]} : vector<64x128xf32> to vector<8x128xf32>
    %251 = arith.addf %249, %250 : vector<8x128xf32>
    %252 = arith.subf %251, %244 : vector<8x128xf32>
    %cst_108 = arith.constant 1.000000e+00 : f32
    %253 = vector.broadcast %cst_108 : f32 to vector<8x128xf32>
    %254 = arith.cmpf ogt, %252, %253 : vector<8x128xf32>
    %255 = arith.extui %254 : vector<8x128xi1> to vector<8x128xi32>
    %256 = arith.sitofp %255 : vector<8x128xi32> to vector<8x128xf32>
    %c6 = arith.constant 6 : index
    %c0_109 = arith.constant 0 : index
    %c0_110 = arith.constant 0 : index
    %257 = vector.load %arg8[%c6, %c0_109, %c0_110] : memref<8x8x128xf32, #tpu.memory_space<vmem>>, vector<1x8x128xf32>
    %258 = vector.shape_cast %257 : vector<1x8x128xf32> to vector<8x128xf32>
    %259 = vector.shape_cast %256 : vector<8x128xf32> to vector<1x8x128xf32>
    tpu.vector_store %arg8[%c6, %c0_109, %c0_110], %259 {strides = array<i32>} : memref<8x8x128xf32, #tpu.memory_space<vmem>>, vector<1x8x128xf32>,
    %cst_111 = arith.constant 0.949999988 : f32
    %260 = vector.broadcast %cst_111 : f32 to vector<8x128xf32>
    %261 = arith.mulf %260, %252 : vector<8x128xf32>
    %262 = vector.extract_strided_slice %173 {offsets = [56, 0], sizes = [8, 128], strides = [1, 1]} : vector<64x128xf32> to vector<8x128xf32>
    %263 = arith.addf %261, %262 : vector<8x128xf32>
    %264 = arith.subf %263, %256 : vector<8x128xf32>
    %cst_112 = arith.constant 1.000000e+00 : f32
    %265 = vector.broadcast %cst_112 : f32 to vector<8x128xf32>
    %266 = arith.cmpf ogt, %264, %265 : vector<8x128xf32>
    %267 = arith.extui %266 : vector<8x128xi1> to vector<8x128xi32>
    %268 = arith.sitofp %267 : vector<8x128xi32> to vector<8x128xf32>
    %c7 = arith.constant 7 : index
    %c0_113 = arith.constant 0 : index
    %c0_114 = arith.constant 0 : index
    %269 = vector.load %arg8[%c7, %c0_113, %c0_114] : memref<8x8x128xf32, #tpu.memory_space<vmem>>, vector<1x8x128xf32>
    %270 = vector.shape_cast %269 : vector<1x8x128xf32> to vector<8x128xf32>
    %271 = vector.shape_cast %268 : vector<8x128xf32> to vector<1x8x128xf32>
    tpu.vector_store %arg8[%c7, %c0_113, %c0_114], %271 {strides = array<i32>} : memref<8x8x128xf32, #tpu.memory_space<vmem>>, vector<1x8x128xf32>,
    return
  }
  func.func @transform_0(%arg0: i32) -> (i32, i32) {
    %c0_i32 = arith.constant 0 : i32
    %c0_i32_0 = arith.constant 0 : i32
    return %arg0, %c0_i32 : i32, i32
  }
  func.func @transform_1(%arg0: i32) -> (i32, i32) {
    %c0_i32 = arith.constant 0 : i32
    %c0_i32_0 = arith.constant 0 : i32
    %c0_i32_1 = arith.constant 0 : i32
    return %c0_i32, %c0_i32_0 : i32, i32
  }
  func.func @transform_2(%arg0: i32) -> (i32, i32) {
    %c0_i32 = arith.constant 0 : i32
    %c0_i32_0 = arith.constant 0 : i32
    %c0_i32_1 = arith.constant 0 : i32
    return %c0_i32, %c0_i32_0 : i32, i32
  }
  func.func @transform_3(%arg0: i32) -> (i32, i32) {
    %c0_i32 = arith.constant 0 : i32
    %c0_i32_0 = arith.constant 0 : i32
    %c0_i32_1 = arith.constant 0 : i32
    return %c0_i32, %c0_i32_0 : i32, i32
  }
  func.func @transform_4(%arg0: i32) -> (i32, i32) {
    %c0_i32 = arith.constant 0 : i32
    %c0_i32_0 = arith.constant 0 : i32
    %c0_i32_1 = arith.constant 0 : i32
    return %c0_i32, %c0_i32_0 : i32, i32
  }
  func.func @transform_5(%arg0: i32) -> (i32, i32) {
    %c0_i32 = arith.constant 0 : i32
    %c0_i32_0 = arith.constant 0 : i32
    %c0_i32_1 = arith.constant 0 : i32
    return %c0_i32, %c0_i32_0 : i32, i32
  }
  func.func @transform_6(%arg0: i32) -> (i32, i32) {
    %c0_i32 = arith.constant 0 : i32
    %c0_i32_0 = arith.constant 0 : i32
    %c0_i32_1 = arith.constant 0 : i32
    return %c0_i32, %c0_i32_0 : i32, i32
  }
  func.func @transform_7(%arg0: i32) -> (i32, i32, i32) {
    %c0_i32 = arith.constant 0 : i32
    %c0_i32_0 = arith.constant 0 : i32
    %c0_i32_1 = arith.constant 0 : i32
    return %c0_i32, %arg0, %c0_i32_0 : i32, i32, i32
  }
}

</mosaic_0001>

<llo_original>
// kernel: tpu_custom_call.1
$region0: #{tpu_custom_call.1}
  #allocation0 [shape = 'u32[]', space=smem, size = 0x4, offset = 0x4, fixed_abs, tag = 'smem constant byte address 0x4 - core index']
  #allocation1 [shape = 'u32[72,128]{1,0:T(1,128)}', space=vmem, size = 0x9000, scoped, tag = 'internal scratch']
  #allocation2 [shape = 'f32[64,128]{1,0:T(8,128)}', space=vmem, size = 0x8000, scoped, tag = 'scratch operand']
  #allocation3 [shape = 'f32[64,128]{1,0:T(8,128)}', space=vmem, size = 0x8000, scoped, tag = 'scratch operand']
  %s0 = inlined_call_operand.hbm [shape: f32[8,128], index: 0, kind: input, shape index: {}]
  %s1 = inlined_call_operand.hbm [shape: f32[128,128], index: 1, kind: input, shape index: {}]
  %s2 = inlined_call_operand.vmem [shape: f32[1,128], index: 2, kind: input, shape index: {}]
  %s3 = inlined_call_operand.hbm [shape: f32[128,128], index: 3, kind: input, shape index: {}]
  %s4 = inlined_call_operand.vmem [shape: f32[1,128], index: 4, kind: input, shape index: {}]
  %s5 = inlined_call_operand.hbm [shape: f32[128,128], index: 5, kind: input, shape index: {}]
  %s6 = inlined_call_operand.vmem [shape: f32[1,128], index: 6, kind: input, shape index: {}]
  %s7 = inlined_call_operand.hbm [shape: f32[8,8,128], index: 7, kind: output, shape index: {}]
  %s8 = sld [smem:[#allocation0]]
  $region54: #{tpu_custom_call.1} parent=0
    _
  %s10 = ssub.s32 1, %s8
  %s11 = scalar_select 0, %s10, %s8
  $region1: #{tpu_custom_call.1} parent=0
    #allocation4 [shape = 'u8[4096]{0}', space=vmem, size = 0x1000, scoped, tag = 'input window, operand 0, single buffered']
    #allocation5 [shape = 's32[1]{0}', space=sflag, size = 0x4, scoped, tag = 'scoped memory for tpu_custom_call.1']
    #allocation6 [shape = 's32[1]{0}', space=sflag, size = 0x4, scoped, tag = 'scoped memory for tpu_custom_call.1']
    #allocation7 [shape = 'u8[65536]{0}', space=vmem, size = 0x10000, scoped, tag = 'input window, operand 1, single buffered']
    #allocation8 [shape = 's32[1]{0}', space=sflag, size = 0x4, scoped, tag = 'scoped memory for tpu_custom_call.1']
    #allocation9 [shape = 'u8[65536]{0}', space=vmem, size = 0x10000, scoped, tag = 'input window, operand 3, single buffered']
    #allocation10 [shape = 'u8[65536]{0}', space=vmem, size = 0x10000, scoped, tag = 'input window, operand 5, single buffered']
    #allocation11 [shape = 's32[1]{0}', space=sflag, size = 0x4, scoped, tag = 'scoped memory for tpu_custom_call.1']
    #allocation12 [shape = 'u8[32768]{0}', space=vmem, size = 0x8000, scoped, tag = 'output window, operand 0, single buffered']
    %12 = vsyncpa [#allocation5], 0
    %13 = vsyncpa [#allocation8], 0
    %14 = vsyncpa [#allocation11], 0
    %15 = vsyncpa [#allocation6], 0
    // Predicated region
    $region2: #{tpu_custom_call.1} parent=1 // pred_check
      _
    $region3: #{tpu_custom_call.1} parent=1 // pred_check_branch
      %17 = sbr.rel (0) target = $region5
    $region4: #{tpu_custom_call.1} parent=1 // pred_region
      %19 = vsyncadd [#allocation5], 0
      %s21 = sshll.u32 %s0, 4
      %s22 = int_to_ptr.hbm [resolvable:$true] %s21
      %s23 = sshll.u32 [#allocation4], 4
      %s24 = int_to_ptr.vmem [resolvable:$true] %s23
      %26 = dma.hbm_to_vmem [thread:$0]  %s22, 128, %s24, [#allocation5]
    $region5: #{tpu_custom_call.1} parent=1 // pred_fallthru
      _
    // Predicated region
    $region6: #{tpu_custom_call.1} parent=1 // pred_check
      _
    $region7: #{tpu_custom_call.1} parent=1 // pred_check_branch
      %28 = sbr.rel (0) target = $region9
    $region8: #{tpu_custom_call.1} parent=1 // pred_region
      %30 = vsyncadd [#allocation8], 0
      %s31 = sshll.u32 %s1, 4
      %s32 = int_to_ptr.hbm [resolvable:$true] %s31
      %s33 = sshll.u32 [#allocation7], 4
      %s34 = int_to_ptr.vmem [resolvable:$true] %s33
      %39 = dma.hbm_to_vmem [thread:$0]  %s32, 2048, %s34, [#allocation8], 128, 128, 8
    $region9: #{tpu_custom_call.1} parent=1 // pred_fallthru
      _
    // Predicated region
    $region10: #{tpu_custom_call.1} parent=1 // pred_check
      _
    $region11: #{tpu_custom_call.1} parent=1 // pred_check_branch
      %41 = sbr.rel (0) target = $region13
    $region12: #{tpu_custom_call.1} parent=1 // pred_region
      _
    $region13: #{tpu_custom_call.1} parent=1 // pred_fallthru
      _
    // Predicated region
    $region14: #{tpu_custom_call.1} parent=1 // pred_check
      _
    $region15: #{tpu_custom_call.1} parent=1 // pred_check_branch
      %43 = sbr.rel (0) target = $region17
    $region16: #{tpu_custom_call.1} parent=1 // pred_region
      %45 = vsyncadd [#allocation8], 0
      %s46 = sshll.u32 %s3, 4
      %s47 = int_to_ptr.hbm [resolvable:$true] %s46
      %s48 = sshll.u32 [#allocation9], 4
      %s49 = int_to_ptr.vmem [resolvable:$true] %s48
      %54 = dma.hbm_to_vmem [thread:$0]  %s47, 2048, %s49, [#allocation8], 128, 128, 8
    $region17: #{tpu_custom_call.1} parent=1 // pred_fallthru
      _
    // Predicated region
    $region18: #{tpu_custom_call.1} parent=1 // pred_check
      _
    $region19: #{tpu_custom_call.1} parent=1 // pred_check_branch
      %56 = sbr.rel (0) target = $region21
    $region20: #{tpu_custom_call.1} parent=1 // pred_region
      _
    $region21: #{tpu_custom_call.1} parent=1 // pred_fallthru
      _
    // Predicated region
    $region22: #{tpu_custom_call.1} parent=1 // pred_check
      _
    $region23: #{tpu_custom_call.1} parent=1 // pred_check_branch
      %58 = sbr.rel (0) target = $region25
    $region24: #{tpu_custom_call.1} parent=1 // pred_region
      %60 = vsyncadd [#allocation11], 0
      %s61 = sshll.u32 %s5, 4
      %s62 = int_to_ptr.hbm [resolvable:$true] %s61
      %s63 = sshll.u32 [#allocation10], 4
      %s64 = int_to_ptr.vmem [resolvable:$true] %s63
      %69 = dma.hbm_to_vmem [thread:$0]  %s62, 2048, %s64, [#allocation11], 128, 128, 8
    $region25: #{tpu_custom_call.1} parent=1 // pred_fallthru
      _
    // Predicated region
    $region26: #{tpu_custom_call.1} parent=1 // pred_check
      _
    $region27: #{tpu_custom_call.1} parent=1 // pred_check_branch
      %71 = sbr.rel (0) target = $region29
    $region28: #{tpu_custom_call.1} parent=1 // pred_region
      _
    $region29: #{tpu_custom_call.1} parent=1 // pred_fallthru
      _
    // Predicated region
    $region30: #{tpu_custom_call.1} parent=1 // pred_check
      _
    $region31: #{tpu_custom_call.1} parent=1 // pred_check_branch
      %73 = sbr.rel (0) target = $region33
    $region32: #{tpu_custom_call.1} parent=1 // pred_region
      %75 = dma.done [#allocation5], 128
    $region33: #{tpu_custom_call.1} parent=1 // pred_fallthru
      _
    // Predicated region
    $region34: #{tpu_custom_call.1} parent=1 // pred_check
      _
    $region35: #{tpu_custom_call.1} parent=1 // pred_check_branch
      %77 = sbr.rel (0) target = $region37
    $region36: #{tpu_custom_call.1} parent=1 // pred_region
      %79 = dma.done [#allocation8], 2048
    $region37: #{tpu_custom_call.1} parent=1 // pred_fallthru
      _
    // Predicated region
    $region38: #{tpu_custom_call.1} parent=1 // pred_check
      _
    $region39: #{tpu_custom_call.1} parent=1 // pred_check_branch
      %81 = sbr.rel (0) target = $region41
    $region40: #{tpu_custom_call.1} parent=1 // pred_region
      %83 = dma.done [#allocation8], 2048
    $region41: #{tpu_custom_call.1} parent=1 // pred_fallthru
      _
    // Predicated region
    $region42: #{tpu_custom_call.1} parent=1 // pred_check
      _
    $region43: #{tpu_custom_call.1} parent=1 // pred_check_branch
      %85 = sbr.rel (0) target = $region45
    $region44: #{tpu_custom_call.1} parent=1 // pred_region
      %87 = dma.done [#allocation11], 2048
    $region45: #{tpu_custom_call.1} parent=1 // pred_fallthru
      _
    %v88 = vld [vmem:[#allocation4] sm:$0xff]
    %v89 = vld [vmem:[#allocation7] sm:$0xff]
    %v90 = vld [vmem:[#allocation7 + $0x8] sm:$0xff]
    %v91 = vld [vmem:[#allocation7 + $0x10] sm:$0xff]
    %v92 = vld [vmem:[#allocation7 + $0x18] sm:$0xff]
    %v93 = vld [vmem:[#allocation7 + $0x20] sm:$0xff]
    %v94 = vld [vmem:[#allocation7 + $0x28] sm:$0xff]
    %v95 = vld [vmem:[#allocation7 + $0x30] sm:$0xff]
    %v96 = vld [vmem:[#allocation7 + $0x38] sm:$0xff]
    %v97 = vld [vmem:[#allocation7 + $0x40] sm:$0xff]
    %v98 = vld [vmem:[#allocation7 + $0x48] sm:$0xff]
    %v99 = vld [vmem:[#allocation7 + $0x50] sm:$0xff]
    %v100 = vld [vmem:[#allocation7 + $0x58] sm:$0xff]
    %v101 = vld [vmem:[#allocation7 + $0x60] sm:$0xff]
    %v102 = vld [vmem:[#allocation7 + $0x68] sm:$0xff]
    %v103 = vld [vmem:[#allocation7 + $0x70] sm:$0xff]
    %v104 = vld [vmem:[#allocation7 + $0x78] sm:$0xff]
    %v105 = vld [vmem:[%s2] sm:$0x1]
    %v107 = vperm.slane %v105, 0
    %109 = vmatpush.msra.mxu0 %v104
    %110 = vmatpush.msra.mxu0 %v103
    %111 = vmatpush.msra.mxu0 %v102
    %112 = vmatpush.msra.mxu0 %v101
    %113 = vmatpush.msra.mxu0 %v100
    %114 = vmatpush.msra.mxu0 %v99
    %115 = vmatpush.msra.mxu0 %v98
    %116 = vmatpush.msra.mxu0 %v97
    %117 = vmatpush.msra.mxu0 %v96
    %118 = vmatpush.msra.mxu0 %v95
    %119 = vmatpush.msra.mxu0 %v94
    %120 = vmatpush.msra.mxu0 %v93
    %121 = vmatpush.msra.mxu0 %v92
    %122 = vmatpush.msra.mxu0 %v91
    %123 = vmatpush.msra.mxu0 %v90
    %124 = vmatpush.msra.mxu0 %v89
    %125 = vmatmul.f32.gmra.mxu0 %v88
    %v126 = vpop.f32.mrf.mxu0
    %v127 = vadd.f32 %v107, %v126
    %128 = vdwg.mxu0
    %v129 = vadd.f32 %v127, 0.0
    %vm130 = vcmp.gt.f32.partialorder %v129, 1.0
    %v131 = vsel %vm130, 1, 0
    %v132 = vcvt.s32.f32 %v131
    %133 = vst [vmem:[#allocation2] sm:$0xff] %v132
    %v134 = vmul.f32 %v129, 0.95
    %v135 = vadd.f32 %v134, %v127
    %v136 = vsub.f32 %v135, %v132
    %vm137 = vcmp.gt.f32.partialorder %v136, 1.0
    %v138 = vsel %vm137, 1, 0
    %v139 = vcvt.s32.f32 %v138
    %140 = vst [vmem:[#allocation2 + $0x8] sm:$0xff] %v139
    %v141 = vmul.f32 %v136, 0.95
    %v142 = vadd.f32 %v141, %v127
    %v143 = vsub.f32 %v142, %v139
    %vm144 = vcmp.gt.f32.partialorder %v143, 1.0
    %v145 = vsel %vm144, 1, 0
    %v146 = vcvt.s32.f32 %v145
    %147 = vst [vmem:[#allocation2 + $0x10] sm:$0xff] %v146
    %v148 = vmul.f32 %v143, 0.95
    %v149 = vadd.f32 %v148, %v127
    %v150 = vsub.f32 %v149, %v146
    %vm151 = vcmp.gt.f32.partialorder %v150, 1.0
    %v152 = vsel %vm151, 1, 0
    %v153 = vcvt.s32.f32 %v152
    %154 = vst [vmem:[#allocation2 + $0x18] sm:$0xff] %v153
    %v155 = vmul.f32 %v150, 0.95
    %v156 = vadd.f32 %v155, %v127
    %v157 = vsub.f32 %v156, %v153
    %vm158 = vcmp.gt.f32.partialorder %v157, 1.0
    %v159 = vsel %vm158, 1, 0
    %v160 = vcvt.s32.f32 %v159
    %161 = vst [vmem:[#allocation2 + $0x20] sm:$0xff] %v160
    %v162 = vmul.f32 %v157, 0.95
    %v163 = vadd.f32 %v162, %v127
    %v164 = vsub.f32 %v163, %v160
    %vm165 = vcmp.gt.f32.partialorder %v164, 1.0
    %v166 = vsel %vm165, 1, 0
    %v167 = vcvt.s32.f32 %v166
    %168 = vst [vmem:[#allocation2 + $0x28] sm:$0xff] %v167
    %v169 = vmul.f32 %v164, 0.95
    %v170 = vadd.f32 %v169, %v127
    %v171 = vsub.f32 %v170, %v167
    %vm172 = vcmp.gt.f32.partialorder %v171, 1.0
    %v173 = vsel %vm172, 1, 0
    %v174 = vcvt.s32.f32 %v173
    %175 = vst [vmem:[#allocation2 + $0x30] sm:$0xff] %v174
    %v176 = vmul.f32 %v171, 0.95
    %v177 = vadd.f32 %v176, %v127
    %v178 = vsub.f32 %v177, %v174
    %vm179 = vcmp.gt.f32.partialorder %v178, 1.0
    %v180 = vsel %vm179, 1, 0
    %v181 = vcvt.s32.f32 %v180
    %182 = vst [vmem:[#allocation2 + $0x38] sm:$0xff] %v181
    %v183 = vld [vmem:[#allocation2] sm:$0xff]
    %v184 = vld [vmem:[#allocation2 + $0x8] sm:$0xff]
    %v185 = vld [vmem:[#allocation2 + $0x10] sm:$0xff]
    %v186 = vld [vmem:[#allocation2 + $0x18] sm:$0xff]
    %v187 = vld [vmem:[#allocation2 + $0x20] sm:$0xff]
    %v188 = vld [vmem:[#allocation2 + $0x28] sm:$0xff]
    %v189 = vld [vmem:[#allocation2 + $0x30] sm:$0xff]
    %v190 = vld [vmem:[#allocation2 + $0x38] sm:$0xff]
    %v191 = vld [vmem:[#allocation9] sm:$0xff]
    %v192 = vld [vmem:[#allocation9 + $0x8] sm:$0xff]
    %v193 = vld [vmem:[#allocation9 + $0x10] sm:$0xff]
    %v194 = vld [vmem:[#allocation9 + $0x18] sm:$0xff]
    %v195 = vld [vmem:[#allocation9 + $0x20] sm:$0xff]
    %v196 = vld [vmem:[#allocation9 + $0x28] sm:$0xff]
    %v197 = vld [vmem:[#allocation9 + $0x30] sm:$0xff]
    %v198 = vld [vmem:[#allocation9 + $0x38] sm:$0xff]
    %v199 = vld [vmem:[#allocation9 + $0x40] sm:$0xff]
    %v200 = vld [vmem:[#allocation9 + $0x48] sm:$0xff]
    %v201 = vld [vmem:[#allocation9 + $0x50] sm:$0xff]
    %v202 = vld [vmem:[#allocation9 + $0x58] sm:$0xff]
    %v203 = vld [vmem:[#allocation9 + $0x60] sm:$0xff]
    %v204 = vld [vmem:[#allocation9 + $0x68] sm:$0xff]
    %v205 = vld [vmem:[#allocation9 + $0x70] sm:$0xff]
    %v206 = vld [vmem:[#allocation9 + $0x78] sm:$0xff]
    %v207 = vld [vmem:[%s4] sm:$0x1]
    %v209 = vperm.slane %v207, 0
    %211 = vmatpush.msra.mxu0 %v206
    %212 = vmatpush.msra.mxu0 %v205
    %213 = vmatpush.msra.mxu0 %v204
    %214 = vmatpush.msra.mxu0 %v203
    %215 = vmatpush.msra.mxu0 %v202
    %216 = vmatpush.msra.mxu0 %v201
    %217 = vmatpush.msra.mxu0 %v200
    %218 = vmatpush.msra.mxu0 %v199
    %219 = vmatpush.msra.mxu0 %v198
    %220 = vmatpush.msra.mxu0 %v197
    %221 = vmatpush.msra.mxu0 %v196
    %222 = vmatpush.msra.mxu0 %v195
    %223 = vmatpush.msra.mxu0 %v194
    %224 = vmatpush.msra.mxu0 %v193
    %225 = vmatpush.msra.mxu0 %v192
    %226 = vmatpush.msra.mxu0 %v191
    %227 = vmatmul.f32.gmra.mxu0 %v183
    %v228 = vpop.f32.mrf.mxu0
    %v229 = vadd.f32 %v209, %v228
    %230 = vmatmul.f32.gmra.mxu0 %v184
    %v231 = vpop.f32.mrf.mxu0
    %v232 = vadd.f32 %v209, %v231
    %233 = vmatmul.f32.gmra.mxu0 %v185
    %v234 = vpop.f32.mrf.mxu0
    %v235 = vadd.f32 %v209, %v234
    %236 = vmatmul.f32.gmra.mxu0 %v186
    %v237 = vpop.f32.mrf.mxu0
    %v238 = vadd.f32 %v209, %v237
    %239 = vmatmul.f32.gmra.mxu0 %v187
    %v240 = vpop.f32.mrf.mxu0
    %v241 = vadd.f32 %v209, %v240
    %242 = vmatmul.f32.gmra.mxu0 %v188
    %v243 = vpop.f32.mrf.mxu0
    %v244 = vadd.f32 %v209, %v243
    %245 = vmatmul.f32.gmra.mxu0 %v189
    %v246 = vpop.f32.mrf.mxu0
    %v247 = vadd.f32 %v209, %v246
    %248 = vmatmul.f32.gmra.mxu0 %v190
    %v249 = vpop.f32.mrf.mxu0
    %v250 = vadd.f32 %v209, %v249
    %251 = vdwg.mxu0
    %v252 = vadd.f32 %v229, 0.0
    %vm253 = vcmp.gt.f32.partialorder %v252, 1.0
    %v254 = vsel %vm253, 1, 0
    %v255 = vcvt.s32.f32 %v254
    %256 = vst [vmem:[#allocation3] sm:$0xff] %v255
    %v257 = vmul.f32 %v252, 0.95
    %v258 = vadd.f32 %v257, %v232
    %v259 = vsub.f32 %v258, %v255
    %vm260 = vcmp.gt.f32.partialorder %v259, 1.0
    %v261 = vsel %vm260, 1, 0
    %v262 = vcvt.s32.f32 %v261
    %263 = vst [vmem:[#allocation3 + $0x8] sm:$0xff] %v262
    %v264 = vmul.f32 %v259, 0.95
    %v265 = vadd.f32 %v264, %v235
    %v266 = vsub.f32 %v265, %v262
    %vm267 = vcmp.gt.f32.partialorder %v266, 1.0
    %v268 = vsel %vm267, 1, 0
    %v269 = vcvt.s32.f32 %v268
    %270 = vst [vmem:[#allocation3 + $0x10] sm:$0xff] %v269
    %v271 = vmul.f32 %v266, 0.95
    %v272 = vadd.f32 %v271, %v238
    %v273 = vsub.f32 %v272, %v269
    %vm274 = vcmp.gt.f32.partialorder %v273, 1.0
    %v275 = vsel %vm274, 1, 0
    %v276 = vcvt.s32.f32 %v275
    %277 = vst [vmem:[#allocation3 + $0x18] sm:$0xff] %v276
    %v278 = vmul.f32 %v273, 0.95
    %v279 = vadd.f32 %v278, %v241
    %v280 = vsub.f32 %v279, %v276
    %vm281 = vcmp.gt.f32.partialorder %v280, 1.0
    %v282 = vsel %vm281, 1, 0
    %v283 = vcvt.s32.f32 %v282
    %284 = vst [vmem:[#allocation3 + $0x20] sm:$0xff] %v283
    %v285 = vmul.f32 %v280, 0.95
    %v286 = vadd.f32 %v285, %v244
    %v287 = vsub.f32 %v286, %v283
    %vm288 = vcmp.gt.f32.partialorder %v287, 1.0
    %v289 = vsel %vm288, 1, 0
    %v290 = vcvt.s32.f32 %v289
    %291 = vst [vmem:[#allocation3 + $0x28] sm:$0xff] %v290
    %v292 = vmul.f32 %v287, 0.95
    %v293 = vadd.f32 %v292, %v247
    %v294 = vsub.f32 %v293, %v290
    %vm295 = vcmp.gt.f32.partialorder %v294, 1.0
    %v296 = vsel %vm295, 1, 0
    %v297 = vcvt.s32.f32 %v296
    %298 = vst [vmem:[#allocation3 + $0x30] sm:$0xff] %v297
    %v299 = vmul.f32 %v294, 0.95
    %v300 = vadd.f32 %v299, %v250
    %v301 = vsub.f32 %v300, %v297
    %vm302 = vcmp.gt.f32.partialorder %v301, 1.0
    %v303 = vsel %vm302, 1, 0
    %v304 = vcvt.s32.f32 %v303
    %305 = vst [vmem:[#allocation3 + $0x38] sm:$0xff] %v304
    %v306 = vld [vmem:[#allocation3] sm:$0xff]
    %v307 = vld [vmem:[#allocation3 + $0x8] sm:$0xff]
    %v308 = vld [vmem:[#allocation3 + $0x10] sm:$0xff]
    %v309 = vld [vmem:[#allocation3 + $0x18] sm:$0xff]
    %v310 = vld [vmem:[#allocation3 + $0x20] sm:$0xff]
    %v311 = vld [vmem:[#allocation3 + $0x28] sm:$0xff]
    %v312 = vld [vmem:[#allocation3 + $0x30] sm:$0xff]
    %v313 = vld [vmem:[#allocation3 + $0x38] sm:$0xff]
    %v314 = vld [vmem:[#allocation10] sm:$0xff]
    %v315 = vld [vmem:[#allocation10 + $0x8] sm:$0xff]
    %v316 = vld [vmem:[#allocation10 + $0x10] sm:$0xff]
    %v317 = vld [vmem:[#allocation10 + $0x18] sm:$0xff]
    %v318 = vld [vmem:[#allocation10 + $0x20] sm:$0xff]
    %v319 = vld [vmem:[#allocation10 + $0x28] sm:$0xff]
    %v320 = vld [vmem:[#allocation10 + $0x30] sm:$0xff]
    %v321 = vld [vmem:[#allocation10 + $0x38] sm:$0xff]
    %v322 = vld [vmem:[#allocation10 + $0x40] sm:$0xff]
    %v323 = vld [vmem:[#allocation10 + $0x48] sm:$0xff]
    %v324 = vld [vmem:[#allocation10 + $0x50] sm:$0xff]
    %v325 = vld [vmem:[#allocation10 + $0x58] sm:$0xff]
    %v326 = vld [vmem:[#allocation10 + $0x60] sm:$0xff]
    %v327 = vld [vmem:[#allocation10 + $0x68] sm:$0xff]
    %v328 = vld [vmem:[#allocation10 + $0x70] sm:$0xff]
    %v329 = vld [vmem:[#allocation10 + $0x78] sm:$0xff]
    %v330 = vld [vmem:[%s6] sm:$0x1]
    %v332 = vperm.slane %v330, 0
    %334 = vmatpush.msra.mxu0 %v329
    %335 = vmatpush.msra.mxu0 %v328
    %336 = vmatpush.msra.mxu0 %v327
    %337 = vmatpush.msra.mxu0 %v326
    %338 = vmatpush.msra.mxu0 %v325
    %339 = vmatpush.msra.mxu0 %v324
    %340 = vmatpush.msra.mxu0 %v323
    %341 = vmatpush.msra.mxu0 %v322
    %342 = vmatpush.msra.mxu0 %v321
    %343 = vmatpush.msra.mxu0 %v320
    %344 = vmatpush.msra.mxu0 %v319
    %345 = vmatpush.msra.mxu0 %v318
    %346 = vmatpush.msra.mxu0 %v317
    %347 = vmatpush.msra.mxu0 %v316
    %348 = vmatpush.msra.mxu0 %v315
    %349 = vmatpush.msra.mxu0 %v314
    %350 = vmatmul.f32.gmra.mxu0 %v306
    %v351 = vpop.f32.mrf.mxu0
    %v352 = vadd.f32 %v332, %v351
    %353 = vmatmul.f32.gmra.mxu0 %v307
    %v354 = vpop.f32.mrf.mxu0
    %v355 = vadd.f32 %v332, %v354
    %356 = vmatmul.f32.gmra.mxu0 %v308
    %v357 = vpop.f32.mrf.mxu0
    %v358 = vadd.f32 %v332, %v357
    %359 = vmatmul.f32.gmra.mxu0 %v309
    %v360 = vpop.f32.mrf.mxu0
    %v361 = vadd.f32 %v332, %v360
    %362 = vmatmul.f32.gmra.mxu0 %v310
    %v363 = vpop.f32.mrf.mxu0
    %v364 = vadd.f32 %v332, %v363
    %365 = vmatmul.f32.gmra.mxu0 %v311
    %v366 = vpop.f32.mrf.mxu0
    %v367 = vadd.f32 %v332, %v366
    %368 = vmatmul.f32.gmra.mxu0 %v312
    %v369 = vpop.f32.mrf.mxu0
    %v370 = vadd.f32 %v332, %v369
    %371 = vmatmul.f32.gmra.mxu0 %v313
    %v372 = vpop.f32.mrf.mxu0
    %v373 = vadd.f32 %v332, %v372
    %374 = vdwg.mxu0
    %v375 = vadd.f32 %v352, 0.0
    %vm376 = vcmp.gt.f32.partialorder %v375, 1.0
    %v377 = vsel %vm376, 1, 0
    %v378 = vcvt.s32.f32 %v377
    %379 = vst [vmem:[#allocation12] sm:$0xff] %v378
    %v380 = vmul.f32 %v375, 0.95
    %v381 = vadd.f32 %v380, %v355
    %v382 = vsub.f32 %v381, %v378
    %vm383 = vcmp.gt.f32.partialorder %v382, 1.0
    %v384 = vsel %vm383, 1, 0
    %v385 = vcvt.s32.f32 %v384
    %s386 = scalar_lea.vmem [#allocation12], 8
    %387 = vst [vmem:[%s386] sm:$0xff] %v385
    %v388 = vmul.f32 %v382, 0.95
    %v389 = vadd.f32 %v388, %v358
    %v390 = vsub.f32 %v389, %v385
    %vm391 = vcmp.gt.f32.partialorder %v390, 1.0
    %v392 = vsel %vm391, 1, 0
    %v393 = vcvt.s32.f32 %v392
    %s394 = scalar_lea.vmem [#allocation12], 16
    %395 = vst [vmem:[%s394] sm:$0xff] %v393
    %v396 = vmul.f32 %v390, 0.95
    %v397 = vadd.f32 %v396, %v361
    %v398 = vsub.f32 %v397, %v393
    %vm399 = vcmp.gt.f32.partialorder %v398, 1.0
    %v400 = vsel %vm399, 1, 0
    %v401 = vcvt.s32.f32 %v400
    %s402 = scalar_lea.vmem [#allocation12], 24
    %403 = vst [vmem:[%s402] sm:$0xff] %v401
    %v404 = vmul.f32 %v398, 0.95
    %v405 = vadd.f32 %v404, %v364
    %v406 = vsub.f32 %v405, %v401
    %vm407 = vcmp.gt.f32.partialorder %v406, 1.0
    %v408 = vsel %vm407, 1, 0
    %v409 = vcvt.s32.f32 %v408
    %s410 = scalar_lea.vmem [#allocation12], 32
    %411 = vst [vmem:[%s410] sm:$0xff] %v409
    %v412 = vmul.f32 %v406, 0.95
    %v413 = vadd.f32 %v412, %v367
    %v414 = vsub.f32 %v413, %v409
    %vm415 = vcmp.gt.f32.partialorder %v414, 1.0
    %v416 = vsel %vm415, 1, 0
    %v417 = vcvt.s32.f32 %v416
    %s418 = scalar_lea.vmem [#allocation12], 40
    %419 = vst [vmem:[%s418] sm:$0xff] %v417
    %v420 = vmul.f32 %v414, 0.95
    %v421 = vadd.f32 %v420, %v370
    %v422 = vsub.f32 %v421, %v417
    %vm423 = vcmp.gt.f32.partialorder %v422, 1.0
    %v424 = vsel %vm423, 1, 0
    %v425 = vcvt.s32.f32 %v424
    %s426 = scalar_lea.vmem [#allocation12], 48
    %427 = vst [vmem:[%s426] sm:$0xff] %v425
    %v428 = vmul.f32 %v422, 0.95
    %v429 = vadd.f32 %v428, %v373
    %v430 = vsub.f32 %v429, %v425
    %vm431 = vcmp.gt.f32.partialorder %v430, 1.0
    %v432 = vsel %vm431, 1, 0
    %v433 = vcvt.s32.f32 %v432
    %s434 = scalar_lea.vmem [#allocation12], 56
    %435 = vst [vmem:[%s434] sm:$0xff] %v433
    // Predicated region
    $region46: #{tpu_custom_call.1} parent=1 // pred_check
      _
    $region47: #{tpu_custom_call.1} parent=1 // pred_check_branch
      %437 = sbr.rel (0) target = $region49
    $region48: #{tpu_custom_call.1} parent=1 // pred_region
      %439 = vsyncadd [#allocation6], 0
      %s440 = sshll.u32 [#allocation12], 4
      %s441 = int_to_ptr.vmem [resolvable:$true] %s440
      %s442 = sshll.u32 %s7, 4
      %s443 = int_to_ptr.hbm [resolvable:$true] %s442
      %448 = dma.vmem_to_hbm [thread:$0]  %s441, 1024, %s443, [#allocation6], 128, 128, 8
    $region49: #{tpu_custom_call.1} parent=1 // pred_fallthru
      _
    // Predicated region
    $region50: #{tpu_custom_call.1} parent=1 // pred_check
      _
    $region51: #{tpu_custom_call.1} parent=1 // pred_check_branch
      %450 = sbr.rel (0) target = $region53
    $region52: #{tpu_custom_call.1} parent=1 // pred_region
      %452 = dma.done [#allocation6], 1024
    $region53: #{tpu_custom_call.1} parent=1 // pred_fallthru
      _
    %453 = vsyncpa [#allocation5], 1
    %454 = vsyncpa [#allocation8], 1
    %455 = vsyncpa [#allocation11], 1
    %456 = vsyncpa [#allocation6], 1

</llo_original>
